<compile_context>
chip_gen: v7x
topology: tpu7x:2x2x1
jax: 0.10.0
libtpu: 0.0.40
codegen_flags: <defaults>
</compile_context>

<pallas_src>
import jax
import jax.numpy as jnp
from jax.experimental import pallas as pl
from jax.experimental.pallas import tpu as pltpu

# ---------------------------------------------------------------- sizes
VOCAB_SIZE = 64
EMB_DIM = 32      # embedding_dim (D)
BATCH = 2         # B
CTX_LEN = 8       # L  (context window words summed per example)
NUM_NEG = 5       # K  (negative samples per example)


def _log_sigmoid(x):
    # branchless, numerically stable:  logsigmoid(x) == -softplus(-x)
    return jnp.minimum(x, 0.0) - jnp.log1p(jnp.exp(-jnp.abs(x)))


def skipgram_loss_kernel(pos_u_ref, pos_v_ref, neg_v_ref,   # scalar-prefetch (SMEM)
                         u_ref, v_ref, len_ref,             # inputs
                         out_ref):                          # output (SMEM)
    # u_ref / v_ref : [V, D] f32 — whole embedding tables resident in VMEM.
    # pos_u_ref [B, L] i32, pos_v_ref [B] i32, neg_v_ref [B, K] i32 in SMEM.
    # len_ref [1] f32 SMEM, out_ref [1, 1] f32 SMEM.
    inv_len = 1.0 / len_ref[0]

    # ---- in-kernel gather + context-word sum:  emb_u[b] = sum_L U[pos_u] / len
    emb_u = []
    for b in range(BATCH):
        acc = u_ref[pl.ds(pos_u_ref[b, 0], 1), :]            # [1, D]
        for l in range(1, CTX_LEN):
            acc = acc + u_ref[pl.ds(pos_u_ref[b, l], 1), :]
        emb_u.append(acc * inv_len)                          # [1, D]

    # ---- in-kernel gather of positive + negative target rows and the fused
    #      dot: one [K+1, D] block per example, single lane-reduce pass.
    scores = []
    for b in range(BATCH):
        rows = [v_ref[pl.ds(pos_v_ref[b], 1), :]]            # positive target
        for k in range(NUM_NEG):
            rows.append(v_ref[pl.ds(neg_v_ref[b, k], 1), :])
        tgt = jnp.concatenate(rows, axis=0)                  # [K+1, D]
        scores.append(jnp.sum(tgt * emb_u[b], axis=-1, keepdims=True))  # [K+1, 1]

    x = jnp.concatenate(scores, axis=0)                      # [B*(K+1), 1]

    # fold the sign: +score for the positive (row 0 of each group), -score for
    # the negatives, then a single logsigmoid (EUP) pass over everything.
    row = jax.lax.broadcasted_iota(jnp.int32, x.shape, 0)
    x = jnp.where(row % (NUM_NEG + 1) == 0, x, -x)
    ls = _log_sigmoid(x)

    out_ref[0, 0] = -jnp.sum(ls) / float(EMB_DIM)


def skipgram_forward(u_weight, v_weight, pos_u, pos_v, neg_v, length):
    """Forward pass: embedding gathers + reductions + logsigmoid all in-kernel."""
    length_arr = jnp.asarray([length], dtype=jnp.float32)

    grid_spec = pltpu.PrefetchScalarGridSpec(
        num_scalar_prefetch=3,                 # pos_u, pos_v, neg_v -> SMEM
        grid=(1,),
        in_specs=[
            pl.BlockSpec(memory_space=pltpu.MemorySpace.VMEM),   # u table (8 KB)
            pl.BlockSpec(memory_space=pltpu.MemorySpace.VMEM),   # v table (8 KB)
            pl.BlockSpec(memory_space=pltpu.MemorySpace.SMEM),   # length scalar
        ],
        out_specs=pl.BlockSpec(memory_space=pltpu.MemorySpace.SMEM),
    )
    # TODO(synk): for production batch sizes, tile the grid over B
    # (dimension_semantics=("parallel",) to use both v7x TensorCores), size the
    # B-tile against v7x's 64 MiB VMEM, accumulate the scalar loss in scratch
    # with pl.when init/finalize, and consider bf16 table storage for DMA bytes.
    out = pl.pallas_call(
        skipgram_loss_kernel,
        grid_spec=grid_spec,
        out_shape=jax.ShapeDtypeStruct((1, 1), jnp.float32),
        compiler_params=pltpu.CompilerParams(
            dimension_semantics=("arbitrary",)),
    )(pos_u.astype(jnp.int32), pos_v.astype(jnp.int32), neg_v.astype(jnp.int32),
      u_weight, v_weight, length_arr)
    return out[0, 0]


def skipgram_forward_ref(u_weight, v_weight, pos_u, pos_v, neg_v, length):
    """Pure-JAX reference mirroring the PyTorch code."""
    emb_u = jnp.sum(u_weight[pos_u], axis=1) / length
    score = jnp.sum(emb_u * v_weight[pos_v], axis=1)
    score = jax.nn.log_sigmoid(score)
    neg_score = jnp.einsum("bkd,bd->bk", v_weight[neg_v], emb_u)
    neg_score = jax.nn.log_sigmoid(-neg_score)
    return -(jnp.sum(score) + jnp.sum(neg_score)) / EMB_DIM


if __name__ == "__main__":
    key = jax.random.PRNGKey(0)
    k_u, k_v, k_pu, k_pv, k_nv = jax.random.split(key, 5)

    # nn.Embedding(vocab, dim, padding_idx=0): default N(0,1) init, row 0 zeroed
    u_weight = jax.random.normal(k_u, (VOCAB_SIZE, EMB_DIM), dtype=jnp.float32)
    u_weight = u_weight.at[0].set(0.0)
    # init_emb(): v_embeddings ~ U(-0.5/D, 0.5/D)
    initrange = 0.5 / EMB_DIM
    v_weight = jax.random.uniform(
        k_v, (VOCAB_SIZE, EMB_DIM), dtype=jnp.float32,
        minval=-initrange, maxval=initrange)

    pos_u = jax.random.randint(k_pu, (BATCH, CTX_LEN), 0, VOCAB_SIZE)
    pos_v = jax.random.randint(k_pv, (BATCH,), 1, VOCAB_SIZE)
    neg_v = jax.random.randint(k_nv, (BATCH, NUM_NEG), 1, VOCAB_SIZE)
    length = float(CTX_LEN)

    loss = skipgram_forward(u_weight, v_weight, pos_u, pos_v, neg_v, length)
    jax.block_until_ready(loss)

    ref = skipgram_forward_ref(u_weight, v_weight, pos_u, pos_v, neg_v, length)
    assert jnp.allclose(loss, ref, rtol=1e-5, atol=1e-5), (loss, ref)

    print("KERNEL_OK")
</pallas_src>

<mosaic_0001>
module attributes {stable_mosaic.version = 11 : i64} {
  func.func @skipgram_loss_kernel(%arg0: i32, %arg1: memref<2x8xi32, #tpu.memory_space<smem>>, %arg2: memref<2xi32, #tpu.memory_space<smem>>, %arg3: memref<2x5xi32, #tpu.memory_space<smem>>, %arg4: memref<64x32xf32, #tpu.memory_space<vmem>>, %arg5: memref<64x32xf32, #tpu.memory_space<vmem>>, %arg6: memref<1xf32, #tpu.memory_space<smem>>, %arg7: memref<1x1xf32, #tpu.memory_space<smem>>) attributes {dimension_semantics = [#tpu.dimension_semantics<arbitrary>], iteration_bounds = array<i64: 1>, scalar_prefetch = 3 : i64, scratch_operands = 0 : i64, tpu.core_type = #tpu.core_type<tc>, window_params = [{pipeline_mode = #tpu.pipeline_mode<synchronous>, transform_indices = @transform_0, window_bounds = array<i64: 64, 32>}, {pipeline_mode = #tpu.pipeline_mode<synchronous>, transform_indices = @transform_1, window_bounds = array<i64: 64, 32>}, {transform_indices = @transform_2, window_bounds = array<i64: 1>}, {transform_indices = @transform_3, window_bounds = array<i64: 1, 1>}]} {
    %c0 = arith.constant 0 : index
    %0 = memref.load %arg6[%c0] : memref<1xf32, #tpu.memory_space<smem>>
    %cst = arith.constant 1.000000e+00 : f32
    %1 = arith.divf %cst, %0 : f32
    %c0_0 = arith.constant 0 : index
    %c0_1 = arith.constant 0 : index
    %2 = memref.load %arg1[%c0_0, %c0_1] : memref<2x8xi32, #tpu.memory_space<smem>>
    %3 = arith.index_cast %2 : i32 to index
    %c0_2 = arith.constant 0 : index
    %4 = vector.load %arg4[%3, %c0_2] : memref<64x32xf32, #tpu.memory_space<vmem>>, vector<1x32xf32>
    %c0_3 = arith.constant 0 : index
    %c1 = arith.constant 1 : index
    %5 = memref.load %arg1[%c0_3, %c1] : memref<2x8xi32, #tpu.memory_space<smem>>
    %6 = arith.index_cast %5 : i32 to index
    %c0_4 = arith.constant 0 : index
    %7 = vector.load %arg4[%6, %c0_4] : memref<64x32xf32, #tpu.memory_space<vmem>>, vector<1x32xf32>
    %8 = arith.addf %4, %7 : vector<1x32xf32>
    %c0_5 = arith.constant 0 : index
    %c2 = arith.constant 2 : index
    %9 = memref.load %arg1[%c0_5, %c2] : memref<2x8xi32, #tpu.memory_space<smem>>
    %10 = arith.index_cast %9 : i32 to index
    %c0_6 = arith.constant 0 : index
    %11 = vector.load %arg4[%10, %c0_6] : memref<64x32xf32, #tpu.memory_space<vmem>>, vector<1x32xf32>
    %12 = arith.addf %8, %11 : vector<1x32xf32>
    %c0_7 = arith.constant 0 : index
    %c3 = arith.constant 3 : index
    %13 = memref.load %arg1[%c0_7, %c3] : memref<2x8xi32, #tpu.memory_space<smem>>
    %14 = arith.index_cast %13 : i32 to index
    %c0_8 = arith.constant 0 : index
    %15 = vector.load %arg4[%14, %c0_8] : memref<64x32xf32, #tpu.memory_space<vmem>>, vector<1x32xf32>
    %16 = arith.addf %12, %15 : vector<1x32xf32>
    %c0_9 = arith.constant 0 : index
    %c4 = arith.constant 4 : index
    %17 = memref.load %arg1[%c0_9, %c4] : memref<2x8xi32, #tpu.memory_space<smem>>
    %18 = arith.index_cast %17 : i32 to index
    %c0_10 = arith.constant 0 : index
    %19 = vector.load %arg4[%18, %c0_10] : memref<64x32xf32, #tpu.memory_space<vmem>>, vector<1x32xf32>
    %20 = arith.addf %16, %19 : vector<1x32xf32>
    %c0_11 = arith.constant 0 : index
    %c5 = arith.constant 5 : index
    %21 = memref.load %arg1[%c0_11, %c5] : memref<2x8xi32, #tpu.memory_space<smem>>
    %22 = arith.index_cast %21 : i32 to index
    %c0_12 = arith.constant 0 : index
    %23 = vector.load %arg4[%22, %c0_12] : memref<64x32xf32, #tpu.memory_space<vmem>>, vector<1x32xf32>
    %24 = arith.addf %20, %23 : vector<1x32xf32>
    %c0_13 = arith.constant 0 : index
    %c6 = arith.constant 6 : index
    %25 = memref.load %arg1[%c0_13, %c6] : memref<2x8xi32, #tpu.memory_space<smem>>
    %26 = arith.index_cast %25 : i32 to index
    %c0_14 = arith.constant 0 : index
    %27 = vector.load %arg4[%26, %c0_14] : memref<64x32xf32, #tpu.memory_space<vmem>>, vector<1x32xf32>
    %28 = arith.addf %24, %27 : vector<1x32xf32>
    %c0_15 = arith.constant 0 : index
    %c7 = arith.constant 7 : index
    %29 = memref.load %arg1[%c0_15, %c7] : memref<2x8xi32, #tpu.memory_space<smem>>
    %30 = arith.index_cast %29 : i32 to index
    %c0_16 = arith.constant 0 : index
    %31 = vector.load %arg4[%30, %c0_16] : memref<64x32xf32, #tpu.memory_space<vmem>>, vector<1x32xf32>
    %32 = arith.addf %28, %31 : vector<1x32xf32>
    %33 = vector.broadcast %1 : f32 to vector<1x32xf32>
    %34 = arith.mulf %32, %33 : vector<1x32xf32>
    %c1_17 = arith.constant 1 : index
    %c0_18 = arith.constant 0 : index
    %35 = memref.load %arg1[%c1_17, %c0_18] : memref<2x8xi32, #tpu.memory_space<smem>>
    %36 = arith.index_cast %35 : i32 to index
    %c0_19 = arith.constant 0 : index
    %37 = vector.load %arg4[%36, %c0_19] : memref<64x32xf32, #tpu.memory_space<vmem>>, vector<1x32xf32>
    %c1_20 = arith.constant 1 : index
    %c1_21 = arith.constant 1 : index
    %38 = memref.load %arg1[%c1_20, %c1_21] : memref<2x8xi32, #tpu.memory_space<smem>>
    %39 = arith.index_cast %38 : i32 to index
    %c0_22 = arith.constant 0 : index
    %40 = vector.load %arg4[%39, %c0_22] : memref<64x32xf32, #tpu.memory_space<vmem>>, vector<1x32xf32>
    %41 = arith.addf %37, %40 : vector<1x32xf32>
    %c1_23 = arith.constant 1 : index
    %c2_24 = arith.constant 2 : index
    %42 = memref.load %arg1[%c1_23, %c2_24] : memref<2x8xi32, #tpu.memory_space<smem>>
    %43 = arith.index_cast %42 : i32 to index
    %c0_25 = arith.constant 0 : index
    %44 = vector.load %arg4[%43, %c0_25] : memref<64x32xf32, #tpu.memory_space<vmem>>, vector<1x32xf32>
    %45 = arith.addf %41, %44 : vector<1x32xf32>
    %c1_26 = arith.constant 1 : index
    %c3_27 = arith.constant 3 : index
    %46 = memref.load %arg1[%c1_26, %c3_27] : memref<2x8xi32, #tpu.memory_space<smem>>
    %47 = arith.index_cast %46 : i32 to index
    %c0_28 = arith.constant 0 : index
    %48 = vector.load %arg4[%47, %c0_28] : memref<64x32xf32, #tpu.memory_space<vmem>>, vector<1x32xf32>
    %49 = arith.addf %45, %48 : vector<1x32xf32>
    %c1_29 = arith.constant 1 : index
    %c4_30 = arith.constant 4 : index
    %50 = memref.load %arg1[%c1_29, %c4_30] : memref<2x8xi32, #tpu.memory_space<smem>>
    %51 = arith.index_cast %50 : i32 to index
    %c0_31 = arith.constant 0 : index
    %52 = vector.load %arg4[%51, %c0_31] : memref<64x32xf32, #tpu.memory_space<vmem>>, vector<1x32xf32>
    %53 = arith.addf %49, %52 : vector<1x32xf32>
    %c1_32 = arith.constant 1 : index
    %c5_33 = arith.constant 5 : index
    %54 = memref.load %arg1[%c1_32, %c5_33] : memref<2x8xi32, #tpu.memory_space<smem>>
    %55 = arith.index_cast %54 : i32 to index
    %c0_34 = arith.constant 0 : index
    %56 = vector.load %arg4[%55, %c0_34] : memref<64x32xf32, #tpu.memory_space<vmem>>, vector<1x32xf32>
    %57 = arith.addf %53, %56 : vector<1x32xf32>
    %c1_35 = arith.constant 1 : index
    %c6_36 = arith.constant 6 : index
    %58 = memref.load %arg1[%c1_35, %c6_36] : memref<2x8xi32, #tpu.memory_space<smem>>
    %59 = arith.index_cast %58 : i32 to index
    %c0_37 = arith.constant 0 : index
    %60 = vector.load %arg4[%59, %c0_37] : memref<64x32xf32, #tpu.memory_space<vmem>>, vector<1x32xf32>
    %61 = arith.addf %57, %60 : vector<1x32xf32>
    %c1_38 = arith.constant 1 : index
    %c7_39 = arith.constant 7 : index
    %62 = memref.load %arg1[%c1_38, %c7_39] : memref<2x8xi32, #tpu.memory_space<smem>>
    %63 = arith.index_cast %62 : i32 to index
    %c0_40 = arith.constant 0 : index
    %64 = vector.load %arg4[%63, %c0_40] : memref<64x32xf32, #tpu.memory_space<vmem>>, vector<1x32xf32>
    %65 = arith.addf %61, %64 : vector<1x32xf32>
    %66 = vector.broadcast %1 : f32 to vector<1x32xf32>
    %67 = arith.mulf %65, %66 : vector<1x32xf32>
    %c0_41 = arith.constant 0 : index
    %68 = memref.load %arg2[%c0_41] : memref<2xi32, #tpu.memory_space<smem>>
    %69 = arith.index_cast %68 : i32 to index
    %c0_42 = arith.constant 0 : index
    %70 = vector.load %arg5[%69, %c0_42] : memref<64x32xf32, #tpu.memory_space<vmem>>, vector<1x32xf32>
    %c0_43 = arith.constant 0 : index
    %c0_44 = arith.constant 0 : index
    %71 = memref.load %arg3[%c0_43, %c0_44] : memref<2x5xi32, #tpu.memory_space<smem>>
    %72 = arith.index_cast %71 : i32 to index
    %c0_45 = arith.constant 0 : index
    %73 = vector.load %arg5[%72, %c0_45] : memref<64x32xf32, #tpu.memory_space<vmem>>, vector<1x32xf32>
    %c0_46 = arith.constant 0 : index
    %c1_47 = arith.constant 1 : index
    %74 = memref.load %arg3[%c0_46, %c1_47] : memref<2x5xi32, #tpu.memory_space<smem>>
    %75 = arith.index_cast %74 : i32 to index
    %c0_48 = arith.constant 0 : index
    %76 = vector.load %arg5[%75, %c0_48] : memref<64x32xf32, #tpu.memory_space<vmem>>, vector<1x32xf32>
    %c0_49 = arith.constant 0 : index
    %c2_50 = arith.constant 2 : index
    %77 = memref.load %arg3[%c0_49, %c2_50] : memref<2x5xi32, #tpu.memory_space<smem>>
    %78 = arith.index_cast %77 : i32 to index
    %c0_51 = arith.constant 0 : index
    %79 = vector.load %arg5[%78, %c0_51] : memref<64x32xf32, #tpu.memory_space<vmem>>, vector<1x32xf32>
    %c0_52 = arith.constant 0 : index
    %c3_53 = arith.constant 3 : index
    %80 = memref.load %arg3[%c0_52, %c3_53] : memref<2x5xi32, #tpu.memory_space<smem>>
    %81 = arith.index_cast %80 : i32 to index
    %c0_54 = arith.constant 0 : index
    %82 = vector.load %arg5[%81, %c0_54] : memref<64x32xf32, #tpu.memory_space<vmem>>, vector<1x32xf32>
    %c0_55 = arith.constant 0 : index
    %c4_56 = arith.constant 4 : index
    %83 = memref.load %arg3[%c0_55, %c4_56] : memref<2x5xi32, #tpu.memory_space<smem>>
    %84 = arith.index_cast %83 : i32 to index
    %c0_57 = arith.constant 0 : index
    %85 = vector.load %arg5[%84, %c0_57] : memref<64x32xf32, #tpu.memory_space<vmem>>, vector<1x32xf32>
    %86 = tpu.concatenate %70, %73, %76, %79, %82, %85 in 0 : vector<1x32xf32>, vector<1x32xf32>, vector<1x32xf32>, vector<1x32xf32>, vector<1x32xf32>, vector<1x32xf32> -> vector<6x32xf32>
    %87 = vector.broadcast %34 : vector<1x32xf32> to vector<6x32xf32>
    %88 = arith.mulf %86, %87 : vector<6x32xf32>
    %cst_58 = arith.constant dense<0.000000e+00> : vector<6xf32>
    %89 = vector.multi_reduction <add>, %88, %cst_58 [1] : vector<6x32xf32> to vector<6xf32>
    %90 = vector.shape_cast %89 : vector<6xf32> to vector<6x1xf32>
    %c1_59 = arith.constant 1 : index
    %91 = memref.load %arg2[%c1_59] : memref<2xi32, #tpu.memory_space<smem>>
    %92 = arith.index_cast %91 : i32 to index
    %c0_60 = arith.constant 0 : index
    %93 = vector.load %arg5[%92, %c0_60] : memref<64x32xf32, #tpu.memory_space<vmem>>, vector<1x32xf32>
    %c1_61 = arith.constant 1 : index
    %c0_62 = arith.constant 0 : index
    %94 = memref.load %arg3[%c1_61, %c0_62] : memref<2x5xi32, #tpu.memory_space<smem>>
    %95 = arith.index_cast %94 : i32 to index
    %c0_63 = arith.constant 0 : index
    %96 = vector.load %arg5[%95, %c0_63] : memref<64x32xf32, #tpu.memory_space<vmem>>, vector<1x32xf32>
    %c1_64 = arith.constant 1 : index
    %c1_65 = arith.constant 1 : index
    %97 = memref.load %arg3[%c1_64, %c1_65] : memref<2x5xi32, #tpu.memory_space<smem>>
    %98 = arith.index_cast %97 : i32 to index
    %c0_66 = arith.constant 0 : index
    %99 = vector.load %arg5[%98, %c0_66] : memref<64x32xf32, #tpu.memory_space<vmem>>, vector<1x32xf32>
    %c1_67 = arith.constant 1 : index
    %c2_68 = arith.constant 2 : index
    %100 = memref.load %arg3[%c1_67, %c2_68] : memref<2x5xi32, #tpu.memory_space<smem>>
    %101 = arith.index_cast %100 : i32 to index
    %c0_69 = arith.constant 0 : index
    %102 = vector.load %arg5[%101, %c0_69] : memref<64x32xf32, #tpu.memory_space<vmem>>, vector<1x32xf32>
    %c1_70 = arith.constant 1 : index
    %c3_71 = arith.constant 3 : index
    %103 = memref.load %arg3[%c1_70, %c3_71] : memref<2x5xi32, #tpu.memory_space<smem>>
    %104 = arith.index_cast %103 : i32 to index
    %c0_72 = arith.constant 0 : index
    %105 = vector.load %arg5[%104, %c0_72] : memref<64x32xf32, #tpu.memory_space<vmem>>, vector<1x32xf32>
    %c1_73 = arith.constant 1 : index
    %c4_74 = arith.constant 4 : index
    %106 = memref.load %arg3[%c1_73, %c4_74] : memref<2x5xi32, #tpu.memory_space<smem>>
    %107 = arith.index_cast %106 : i32 to index
    %c0_75 = arith.constant 0 : index
    %108 = vector.load %arg5[%107, %c0_75] : memref<64x32xf32, #tpu.memory_space<vmem>>, vector<1x32xf32>
    %109 = tpu.concatenate %93, %96, %99, %102, %105, %108 in 0 : vector<1x32xf32>, vector<1x32xf32>, vector<1x32xf32>, vector<1x32xf32>, vector<1x32xf32>, vector<1x32xf32> -> vector<6x32xf32>
    %110 = vector.broadcast %67 : vector<1x32xf32> to vector<6x32xf32>
    %111 = arith.mulf %109, %110 : vector<6x32xf32>
    %cst_76 = arith.constant dense<0.000000e+00> : vector<6xf32>
    %112 = vector.multi_reduction <add>, %111, %cst_76 [1] : vector<6x32xf32> to vector<6xf32>
    %113 = vector.shape_cast %112 : vector<6xf32> to vector<6x1xf32>
    %114 = tpu.concatenate %90, %113 in 0 : vector<6x1xf32>, vector<6x1xf32> -> vector<12x1xf32>
    %115 = tpu.iota {dimensions = array<i32: 0>} : vector<12x1xi32>
    %c6_i32 = arith.constant 6 : i32
    %c0_i32 = arith.constant 0 : i32
    %116 = arith.cmpi eq, %c6_i32, %c0_i32 : i32
    %c1_i32 = arith.constant 1 : i32
    %117 = arith.select %116, %c1_i32, %c6_i32 : i32
    %118 = vector.broadcast %117 : i32 to vector<12x1xi32>
    %119 = arith.remsi %115, %118 : vector<12x1xi32>
    %c0_i32_77 = arith.constant 0 : i32
    %120 = vector.broadcast %c0_i32_77 : i32 to vector<12x1xi32>
    %121 = arith.cmpi ne, %119, %120 : vector<12x1xi32>
    %c0_i32_78 = arith.constant 0 : i32
    %122 = vector.broadcast %c0_i32_78 : i32 to vector<12x1xi32>
    %123 = arith.cmpi slt, %119, %122 : vector<12x1xi32>
    %c0_i32_79 = arith.constant 0 : i32
    %124 = arith.cmpi slt, %117, %c0_i32_79 : i32
    %125 = vector.broadcast %124 : i1 to vector<12x1xi1>
    %126 = vector.broadcast %125 : vector<12x1xi1> to vector<12x1xi1>
    %127 = arith.xori %123, %126 : vector<12x1xi1>
    %128 = arith.andi %127, %121 : vector<12x1xi1>
    %129 = vector.broadcast %117 : i32 to vector<12x1xi32>
    %130 = arith.addi %119, %129 : vector<12x1xi32>
    %131 = arith.select %128, %130, %119 : vector<12x1xi1>, vector<12x1xi32>
    %c0_i32_80 = arith.constant 0 : i32
    %132 = vector.broadcast %c0_i32_80 : i32 to vector<12x1xi32>
    %133 = arith.cmpi eq, %131, %132 : vector<12x1xi32>
    %cst_81 = arith.constant 0.000000e+00 : f32
    %134 = vector.broadcast %cst_81 : f32 to vector<12x1xf32>
    %135 = arith.subf %134, %114 : vector<12x1xf32>
    %136 = arith.select %133, %114, %135 : vector<12x1xi1>, vector<12x1xf32>
    %cst_82 = arith.constant 0.000000e+00 : f32
    %137 = vector.broadcast %cst_82 : f32 to vector<12x1xf32>
    %138 = arith.minimumf %136, %137 : vector<12x1xf32>
    %139 = math.absf %136 : vector<12x1xf32>
    %cst_83 = arith.constant 0.000000e+00 : f32
    %140 = vector.broadcast %cst_83 : f32 to vector<12x1xf32>
    %141 = arith.subf %140, %139 : vector<12x1xf32>
    %142 = math.exp %141 : vector<12x1xf32>
    %143 = math.log1p %142 : vector<12x1xf32>
    %144 = arith.subf %138, %143 : vector<12x1xf32>
    %145 = vector.shape_cast %144 : vector<12x1xf32> to vector<1x12x1xf32>
    %cst_84 = arith.constant dense<0.000000e+00> : vector<1xf32>
    %146 = vector.multi_reduction <add>, %145, %cst_84 [1, 2] : vector<1x12x1xf32> to vector<1xf32>
    %147 = vector.shape_cast %146 : vector<1xf32> to vector<1x1x1xf32>
    %148 = vector.extract %147[0, 0, 0] : f32 from vector<1x1x1xf32>
    %cst_85 = arith.constant 0.000000e+00 : f32
    %149 = arith.subf %cst_85, %148 : f32
    %cst_86 = arith.constant 3.200000e+01 : f32
    %150 = arith.divf %149, %cst_86 : f32
    %c0_87 = arith.constant 0 : index
    %c0_88 = arith.constant 0 : index
    %151 = memref.load %arg7[%c0_87, %c0_88] : memref<1x1xf32, #tpu.memory_space<smem>>
    memref.store %150, %arg7[%c0_87, %c0_88] : memref<1x1xf32, #tpu.memory_space<smem>>
    return
  }
  func.func @transform_0(%arg0: i32, %arg1: memref<2x8xi32, #tpu.memory_space<smem>>, %arg2: memref<2xi32, #tpu.memory_space<smem>>, %arg3: memref<2x5xi32, #tpu.memory_space<smem>>) -> (i32, i32) {
    %c0_i32 = arith.constant 0 : i32
    %c0_i32_0 = arith.constant 0 : i32
    %c0_i32_1 = arith.constant 0 : i32
    return %c0_i32, %c0_i32_0 : i32, i32
  }
  func.func @transform_1(%arg0: i32, %arg1: memref<2x8xi32, #tpu.memory_space<smem>>, %arg2: memref<2xi32, #tpu.memory_space<smem>>, %arg3: memref<2x5xi32, #tpu.memory_space<smem>>) -> (i32, i32) {
    %c0_i32 = arith.constant 0 : i32
    %c0_i32_0 = arith.constant 0 : i32
    %c0_i32_1 = arith.constant 0 : i32
    return %c0_i32, %c0_i32_0 : i32, i32
  }
  func.func @transform_2(%arg0: i32, %arg1: memref<2x8xi32, #tpu.memory_space<smem>>, %arg2: memref<2xi32, #tpu.memory_space<smem>>, %arg3: memref<2x5xi32, #tpu.memory_space<smem>>) -> i32 {
    %c0_i32 = arith.constant 0 : i32
    %c0_i32_0 = arith.constant 0 : i32
    return %c0_i32 : i32
  }
  func.func @transform_3(%arg0: i32, %arg1: memref<2x8xi32, #tpu.memory_space<smem>>, %arg2: memref<2xi32, #tpu.memory_space<smem>>, %arg3: memref<2x5xi32, #tpu.memory_space<smem>>) -> (i32, i32) {
    %c0_i32 = arith.constant 0 : i32
    %c0_i32_0 = arith.constant 0 : i32
    %c0_i32_1 = arith.constant 0 : i32
    return %c0_i32, %c0_i32_0 : i32, i32
  }
}

</mosaic_0001>

<llo_original>
// kernel: tpu_custom_call.1
$region0: #{tpu_custom_call.1}
  #allocation0 [shape = 'u32[]', space=smem, size = 0x4, offset = 0x4, fixed_abs, tag = 'smem constant byte address 0x4 - core index']
  #allocation1 [shape = 'u32[144,128]{1,0:T(1,128)}', space=vmem, size = 0x12000, scoped, tag = 'internal scratch']
  #allocation2 [shape = 's32[1]{0}', space=sflag, size = 0x4, scoped, tag = 'scoped memory for tpu_custom_call.1']
  #allocation3 [shape = 'u8[1024]{0}', space=smem, size = 0x400, scoped, tag = 'prefetched SMEM operand 0']
  #allocation4 [shape = 'u8[512]{0}', space=smem, size = 0x200, scoped, tag = 'prefetched SMEM operand 1']
  #allocation5 [shape = 'u8[1024]{0}', space=smem, size = 0x400, scoped, tag = 'prefetched SMEM operand 2']
  #allocation6 [shape = 'f32[1]{0:T(128)S(6)}', space=smem, size = 0x200, scoped, tag = 'scoped memory for tpu_custom_call.1']
  %s0 = inlined_call_operand.vmem [shape: s32[2,8], index: 0, kind: input, shape index: {}]
  %s1 = inlined_call_operand.vmem [shape: s32[2], index: 1, kind: input, shape index: {}]
  %s2 = inlined_call_operand.vmem [shape: s32[2,5], index: 2, kind: input, shape index: {}]
  %s3 = inlined_call_operand.vmem [shape: f32[64,32], index: 3, kind: input, shape index: {}]
  %s4 = inlined_call_operand.vmem [shape: f32[64,32], index: 4, kind: input, shape index: {}]
  %s5 = inlined_call_operand.<no memory space> [shape: f32[1], index: 5, kind: input, shape index: {}]
  %s6 = inlined_call_operand.hbm [shape: f32[1,1], index: 6, kind: output, shape index: {}]
  %s7 = sld [smem:[#allocation0]]
  $region22: #{tpu_custom_call.1} parent=0
    _
  %s9 = ssub.s32 1, %s7
  %s10 = scalar_select 0, %s9, %s7
  %s11 = sshll.u32 %s0, 4
  %s12 = int_to_ptr.vmem [resolvable:$true] %s11
  %14 = dma.vmem_to_smem %s12, 32, [#allocation3], [#allocation2]
  %s15 = sshll.u32 %s1, 4
  %s16 = int_to_ptr.vmem [resolvable:$true] %s15
  %18 = dma.vmem_to_smem %s16, 16, [#allocation4], [#allocation2]
  %s19 = sshll.u32 %s2, 4
  %s20 = int_to_ptr.vmem [resolvable:$true] %s19
  %22 = dma.vmem_to_smem %s20, 32, [#allocation5], [#allocation2]
  %23 = sst [smem:[#allocation6]] %s5
  %24 = dma.done [#allocation2], 80
  %25 = sfence
  $region1: #{tpu_custom_call.1} parent=0
    #allocation7 [shape = 'u8[512]{0}', space=smem, size = 0x200, scoped, tag = 'output window, operand 0, single buffered']
    #allocation8 [shape = 's32[1]{0}', space=sflag, size = 0x4, scoped, tag = 'scoped memory for tpu_custom_call.1']
    %26 = vsyncpa [#allocation8], 0
    // Predicated region
    $region2: #{tpu_custom_call.1} parent=1 // pred_check
      _
    $region3: #{tpu_custom_call.1} parent=1 // pred_check_branch
      %28 = sbr.rel (0) target = $region5
    $region4: #{tpu_custom_call.1} parent=1 // pred_region
      _
    $region5: #{tpu_custom_call.1} parent=1 // pred_fallthru
      _
    // Predicated region
    $region6: #{tpu_custom_call.1} parent=1 // pred_check
      _
    $region7: #{tpu_custom_call.1} parent=1 // pred_check_branch
      %30 = sbr.rel (0) target = $region9
    $region8: #{tpu_custom_call.1} parent=1 // pred_region
      _
    $region9: #{tpu_custom_call.1} parent=1 // pred_fallthru
      _
    // Predicated region
    $region10: #{tpu_custom_call.1} parent=1 // pred_check
      _
    $region11: #{tpu_custom_call.1} parent=1 // pred_check_branch
      %32 = sbr.rel (0) target = $region13
    $region12: #{tpu_custom_call.1} parent=1 // pred_region
      _
    $region13: #{tpu_custom_call.1} parent=1 // pred_fallthru
      _
    %s33 = sld [smem:[#allocation6]]
    %v34 = vstv %s33
    %v35 = vrcp.pop %v34
    %s36 = vtos %v35
    %s37 = sld [smem:[#allocation3]]
    %s38 = scalar_lea.vmem %s3, %s37
    %v39 = vld [vmem:[%s38] sm:$0x1]
    %s40 = sld [smem:[#allocation3 + $0x1]]
    %s41 = scalar_lea.vmem %s3, %s40
    %v42 = vld [vmem:[%s41] sm:$0x1]
    %v43 = vadd.f32 %v39, %v42
    %s44 = sld [smem:[#allocation3 + $0x2]]
    %s45 = scalar_lea.vmem %s3, %s44
    %v46 = vld [vmem:[%s45] sm:$0x1]
    %v47 = vadd.f32 %v43, %v46
    %s48 = sld [smem:[#allocation3 + $0x3]]
    %s49 = scalar_lea.vmem %s3, %s48
    %v50 = vld [vmem:[%s49] sm:$0x1]
    %v51 = vadd.f32 %v47, %v50
    %s52 = sld [smem:[#allocation3 + $0x4]]
    %s53 = scalar_lea.vmem %s3, %s52
    %v54 = vld [vmem:[%s53] sm:$0x1]
    %v55 = vadd.f32 %v51, %v54
    %s56 = sld [smem:[#allocation3 + $0x5]]
    %s57 = scalar_lea.vmem %s3, %s56
    %v58 = vld [vmem:[%s57] sm:$0x1]
    %v59 = vadd.f32 %v55, %v58
    %s60 = sld [smem:[#allocation3 + $0x6]]
    %s61 = scalar_lea.vmem %s3, %s60
    %v62 = vld [vmem:[%s61] sm:$0x1]
    %v63 = vadd.f32 %v59, %v62
    %s64 = sld [smem:[#allocation3 + $0x7]]
    %s65 = scalar_lea.vmem %s3, %s64
    %v66 = vld [vmem:[%s65] sm:$0x1]
    %v67 = vadd.f32 %v63, %v66
    %v68 = vstv %s36
    %v69 = vmul.f32 %v67, %v68
    %s70 = sld [smem:[#allocation3 + $0x80]]
    %s71 = scalar_lea.vmem %s3, %s70
    %v72 = vld [vmem:[%s71] sm:$0x1]
    %s73 = sld [smem:[#allocation3 + $0x81]]
    %s74 = scalar_lea.vmem %s3, %s73
    %v75 = vld [vmem:[%s74] sm:$0x1]
    %v76 = vadd.f32 %v72, %v75
    %s77 = sld [smem:[#allocation3 + $0x82]]
    %s78 = scalar_lea.vmem %s3, %s77
    %v79 = vld [vmem:[%s78] sm:$0x1]
    %v80 = vadd.f32 %v76, %v79
    %s81 = sld [smem:[#allocation3 + $0x83]]
    %s82 = scalar_lea.vmem %s3, %s81
    %v83 = vld [vmem:[%s82] sm:$0x1]
    %v84 = vadd.f32 %v80, %v83
    %s85 = sld [smem:[#allocation3 + $0x84]]
    %s86 = scalar_lea.vmem %s3, %s85
    %v87 = vld [vmem:[%s86] sm:$0x1]
    %v88 = vadd.f32 %v84, %v87
    %s89 = sld [smem:[#allocation3 + $0x85]]
    %s90 = scalar_lea.vmem %s3, %s89
    %v91 = vld [vmem:[%s90] sm:$0x1]
    %v92 = vadd.f32 %v88, %v91
    %s93 = sld [smem:[#allocation3 + $0x86]]
    %s94 = scalar_lea.vmem %s3, %s93
    %v95 = vld [vmem:[%s94] sm:$0x1]
    %v96 = vadd.f32 %v92, %v95
    %s97 = sld [smem:[#allocation3 + $0x87]]
    %s98 = scalar_lea.vmem %s3, %s97
    %v99 = vld [vmem:[%s98] sm:$0x1]
    %v100 = vadd.f32 %v96, %v99
    %v101 = vmul.f32 %v100, %v68
    %s102 = sld [smem:[#allocation4]]
    %s103 = scalar_lea.vmem %s4, %s102
    %v104 = vld [vmem:[%s103] sm:$0x1]
    %s105 = sld [smem:[#allocation5]]
    %s106 = scalar_lea.vmem %s4, %s105
    %v107 = vld [vmem:[%s106] sm:$0x1]
    %s108 = sld [smem:[#allocation5 + $0x1]]
    %s109 = scalar_lea.vmem %s4, %s108
    %v110 = vld [vmem:[%s109] sm:$0x1]
    %s111 = sld [smem:[#allocation5 + $0x2]]
    %s112 = scalar_lea.vmem %s4, %s111
    %v113 = vld [vmem:[%s112] sm:$0x1]
    %s114 = sld [smem:[#allocation5 + $0x3]]
    %s115 = scalar_lea.vmem %s4, %s114
    %v116 = vld [vmem:[%s115] sm:$0x1]
    %s117 = sld [smem:[#allocation5 + $0x4]]
    %s118 = scalar_lea.vmem %s4, %s117
    %v119 = vld [vmem:[%s118] sm:$0x1]
    %v121 = vrot.slane %v107, 7
    %v124 = vrot.slane %v110, 6
    %v127 = vrot.slane %v113, 5
    %v130 = vrot.slane %v116, 4
    %v133 = vrot.slane %v119, 3
    %vm135 = vcmask 1040384
    %v136 = vsel %vm135, %v104, %v121
    %vm137 = vcmask 1041408
    %v138 = vsel %vm137, %v136, %v124
    %vm139 = vcmask 1042432
    %v140 = vsel %vm139, %v138, %v127
    %vm141 = vcmask 1043456
    %v142 = vsel %vm141, %v140, %v130
    %vm143 = vcmask 1044480
    %v144 = vsel %vm143, %v142, %v133
    %v145 = vlaneseq
    %v146 = vshrl.u32 %v145, 7
    %v147 = vsub.s32 0, %v146
    %v148 = vrot.slane %v69, %v147
    %v149 = vmul.f32 %v144, %v148
    %vm150 = vcmask 259072
    %v151 = vsel %vm150, %v149, 0.0
    %152 = vadd.xlane.f32.xlu0 %v151
    %v153 = vpop.xlane.xlu0 %152
    %s154 = sld [smem:[#allocation4 + $0x1]]
    %s155 = scalar_lea.vmem %s4, %s154
    %v156 = vld [vmem:[%s155] sm:$0x1]
    %s157 = sld [smem:[#allocation5 + $0x80]]
    %s158 = scalar_lea.vmem %s4, %s157
    %v159 = vld [vmem:[%s158] sm:$0x1]
    %s160 = sld [smem:[#allocation5 + $0x81]]
    %s161 = scalar_lea.vmem %s4, %s160
    %v162 = vld [vmem:[%s161] sm:$0x1]
    %s163 = sld [smem:[#allocation5 + $0x82]]
    %s164 = scalar_lea.vmem %s4, %s163
    %v165 = vld [vmem:[%s164] sm:$0x1]
    %s166 = sld [smem:[#allocation5 + $0x83]]
    %s167 = scalar_lea.vmem %s4, %s166
    %v168 = vld [vmem:[%s167] sm:$0x1]
    %s169 = sld [smem:[#allocation5 + $0x84]]
    %s170 = scalar_lea.vmem %s4, %s169
    %v171 = vld [vmem:[%s170] sm:$0x1]
    %v173 = vrot.slane %v159, 7
    %v176 = vrot.slane %v162, 6
    %v179 = vrot.slane %v165, 5
    %v182 = vrot.slane %v168, 4
    %v185 = vrot.slane %v171, 3
    %v187 = vsel %vm135, %v156, %v173
    %v188 = vsel %vm137, %v187, %v176
    %v189 = vsel %vm139, %v188, %v179
    %v190 = vsel %vm141, %v189, %v182
    %v191 = vsel %vm143, %v190, %v185
    %v192 = vlaneseq
    %v193 = vshrl.u32 %v192, 7
    %v194 = vsub.s32 0, %v193
    %v195 = vrot.slane %v101, %v194
    %v196 = vmul.f32 %v191, %v195
    %v197 = vsel %vm150, %v196, 0.0
    %198 = vadd.xlane.f32.xlu0 %v197
    %v199 = vpop.xlane.xlu0 %198
    %v201 = vrot.slane %v199, 2
    %vm203 = vcmask 1045504
    %v204 = vsel %vm203, %v153, %v201
    %v205 = vlaneseq
    %v206 = vshrl.u32 %v205, 7
    %v207 = vadd.s32 %v206, 8
    %vm208 = vcmp.lt.s32.totalorder %v206, 0
    %v209 = vsub.s32 0, %v206
    %v210 = vsel %vm208, %v209, %v206
    %v211 = vmul.u32.u64.compose %v210, 2863311531
    %v212 = vextract.low.u32 %v211
    %v213 = vextract.high.u32 %v211
    %v214 = vshrl.u32 %v213, 2
    %v215 = vmul.u32 %v214, 6
    %v216 = vsub.s32 %v210, %v215
    %v217 = vsub.s32 0, %v216
    %v218 = vsel %vm208, %v217, %v216
    %vm219 = vcmp.lt.s32.totalorder %v207, 0
    %v220 = vsub.s32 0, %v207
    %v221 = vsel %vm219, %v220, %v207
    %v222 = vmul.u32.u64.compose %v221, 2863311531
    %v223 = vextract.low.u32 %v222
    %v224 = vextract.high.u32 %v222
    %v225 = vshrl.u32 %v224, 2
    %v226 = vmul.u32 %v225, 6
    %v227 = vsub.s32 %v221, %v226
    %v228 = vsub.s32 0, %v227
    %v229 = vsel %vm219, %v228, %v227
    %vm230 = vcmp.ne.s32.totalorder %v218, 0
    %vm231 = vcmp.ne.s32.totalorder %v229, 0
    %vm232 = vcmp.lt.s32.totalorder %v218, 0
    %vm233 = vcmp.lt.s32.totalorder %v229, 0
    %vm234 = vmand %vm232, %vm230
    %vm235 = vmand %vm233, %vm231
    %v236 = vadd.s32 %v218, 6
    %v237 = vadd.s32 %v229, 6
    %v238 = vsel %vm234, %v236, %v218
    %v239 = vsel %vm235, %v237, %v229
    %vm240 = vcmp.eq.s32.totalorder %v238, 0
    %vm241 = vcmp.eq.s32.totalorder %v239, 0
    %v242 = vsub.f32 0.0, %v204
    %v243 = vsub.f32 0.0, %v201
    %v244 = vsel %vm240, %v204, %v242
    %v245 = vsel %vm241, %v201, %v243
    %v246 = vmin.f32 %v244, 0.0
    %v247 = vmin.f32 %v245, 0.0
    %v248 = vand.u32 2147483647, %v244
    %v249 = vand.u32 2147483647, %v245
    %v250 = vsub.f32 0.0, %v248
    %v251 = vsub.f32 0.0, %v249
    %v252 = vmul.f32 %v250, 1.442695
    %v253 = vpow.pop %v252
    %v254 = vmul.f32 %v251, 1.442695
    %v255 = vpow.pop %v254
    %v256 = vadd.f32 %v253, 1.0
    %v257 = vlog2.pop %v256
    %v258 = vmul.f32 %v257, 0.6931472
    %v259 = vmul.f32 -0.5, %v253
    %v260 = vadd.f32 %v259, 1.0
    %v261 = vmul.f32 %v260, %v253
    %v262 = vand.u32 2147483647, %v253
    %vm263 = vcmp.lt.f32.partialorder %v262, 0.0004427343
    %v264 = vsel %vm263, %v261, %v258
    %v265 = vadd.f32 %v255, 1.0
    %v266 = vlog2.pop %v265
    %v267 = vmul.f32 %v266, 0.6931472
    %v268 = vmul.f32 -0.5, %v255
    %v269 = vadd.f32 %v268, 1.0
    %v270 = vmul.f32 %v269, %v255
    %v271 = vand.u32 2147483647, %v255
    %vm272 = vcmp.lt.f32.partialorder %v271, 0.0004427343
    %v273 = vsel %vm272, %v270, %v267
    %v274 = vsub.f32 %v246, %v264
    %v275 = vsub.f32 %v247, %v273
    %vm276 = vcmask 7168
    %v277 = vsel %vm276, %v274, 0.0
    %vm278 = vcmask 3072
    %v279 = vsel %vm278, %v275, 0.0
    %v280 = vadd.f32 %v277, %v279
    %281 = vadd.xlane.f32.xlu0 %v280
    %v282 = vpop.xlane.xlu0 %281
    %v283 = vrot.slane %v282, 4
    %v284 = vadd.f32 %v282, %v283
    %v285 = vrot.slane %v284, 2
    %v286 = vadd.f32 %v284, %v285
    %v287 = vrot.slane %v286, 1
    %v288 = vadd.f32 %v286, %v287
    %s289 = vtos %v288
    %s290 = ssub.f32 0.0, %s289
    %v291 = vrcp.pop 32.0
    %s292 = vtos %v291
    %s293 = smul.f32 %s290, %s292
    %s294 = scalar_lea.smem [#allocation7], 0
    %295 = sst [smem:[%s294]] %s293
    // Predicated region
    $region14: #{tpu_custom_call.1} parent=1 // pred_check
      _
    $region15: #{tpu_custom_call.1} parent=1 // pred_check_branch
      %297 = sbr.rel (0) target = $region17
    $region16: #{tpu_custom_call.1} parent=1 // pred_region
      %s299 = ssub.s32 16, 16
      %300 = vsyncadd [#allocation8], %s299
      %303 = dma.smem_to_hbm [#allocation7], 16, %s6, [#allocation8]
    $region17: #{tpu_custom_call.1} parent=1 // pred_fallthru
      _
    // Predicated region
    $region18: #{tpu_custom_call.1} parent=1 // pred_check
      _
    $region19: #{tpu_custom_call.1} parent=1 // pred_check_branch
      %305 = sbr.rel (0) target = $region21
    $region20: #{tpu_custom_call.1} parent=1 // pred_region
      %306 = dma.done [#allocation8], 16
    $region21: #{tpu_custom_call.1} parent=1 // pred_fallthru
      _
    %307 = sfence
    %308 = vsyncpa [#allocation8], 1

</llo_original>
